<compile_context>
chip_gen: v6e
topology: v6e:2x2x1
jax: 0.10.0
libtpu: 0.0.40
codegen_flags: <defaults>
</compile_context>

<pallas_src>
import jax
import jax.numpy as jnp
from jax import lax
from jax.experimental import pallas as pl
from jax.experimental.pallas import tpu as pltpu


def _round_up(n, m):
    return ((n + m - 1) // m) * m


def _mmgn_kernel(x_ref, m_ref, bias_ref, smat_ref, mask_ref, a_ref, o_ref):
    # x_ref    : (TB, DP)   m_ref  : (CP, DP)   bias_ref : (1, CP)
    # smat_ref : (CP, CP)   mask_ref: (1, CP)   a_ref    : (1, DP)   o_ref : (TB, DP)
    x = x_ref[...]
    m = m_ref[...]

    # Fused first matmul: P = x @ M^T, contracting the last axes (no transpose).
    p = lax.dot_general(
        x, m,
        dimension_numbers=(((1,), (1,)), ((), ())),
        preferred_element_type=jnp.float32,
    )                                                          # (TB, CP)

    # Head columns: vx = V(x); tail columns: z_k = W_k(x) + b_k (bias is zero on head).
    z = p + bias_ref[...]                                      # (TB, CP)

    # scaling_function: per-layer mean over its hidden block, broadcast back over the
    # block, computed as one block-diagonal matmul. Zero on the V head / padding cols.
    scale = jnp.dot(z, smat_ref[...], preferred_element_type=jnp.float32)  # (TB, CP)

    # Blend: head columns pass vx straight through; tail columns become scale*tanh(z).
    mask = mask_ref[...]                                       # (1, CP), 0/1
    q = z + mask * (scale * jnp.tanh(z) - z)                   # (TB, CP)

    # Fused second matmul: vx @ V + sum_k (scale_k * tanh(z_k)) @ W_k in one MXU op.
    out_core = jnp.dot(q, m, preferred_element_type=jnp.float32)  # (TB, DP)

    o_ref[...] = (a_ref[...] + out_core).astype(o_ref.dtype)


def mmgn_forward(x, v_weight, w_stack, b_stack, a, *, batch_tile=256):
    """x: (B, D); v_weight: (V, D); w_stack: (L, H, D); b_stack: (L, H); a: (D,)."""
    B, D = x.shape
    V = v_weight.shape[0]
    L, H, _ = w_stack.shape
    C = V + L * H

    f32 = jnp.float32
    DP = _round_up(D, 128)               # lane-dense x / out / weight columns
    CP = _round_up(C, 128)               # lane-dense stacked dimension
    TB = B if B <= batch_tile else batch_tile
    BP = _round_up(B, TB)

    # Stacked weight [V ; W_0 ; ... ; W_{L-1}], zero-padded to (CP, DP).
    m_stack = jnp.zeros((CP, DP), f32)
    m_stack = m_stack.at[:V, :D].set(v_weight.astype(f32))
    m_stack = m_stack.at[V:C, :D].set(w_stack.reshape(L * H, D).astype(f32))

    # Bias: zero on the V head and padding; per-layer biases on the tail.
    bias_full = jnp.zeros((1, CP), f32).at[0, V:C].set(b_stack.reshape(L * H).astype(f32))

    # Block-diagonal mean matrix: S[i, j] = 1/H iff i and j are tail cols of the same layer.
    idx = jnp.arange(CP)
    layer_of = jnp.where((idx >= V) & (idx < C), (idx - V) // H, -1)
    smat = (((layer_of[:, None] == layer_of[None, :]) & (layer_of[:, None] >= 0))
            .astype(f32) / float(H))

    # Tail mask: 1.0 on W-columns, 0.0 on the V head and padding.
    tail_mask = ((idx >= V) & (idx < C)).astype(f32)[None, :]

    a_pad = jnp.zeros((1, DP), f32).at[0, :D].set(a.astype(f32))
    x_pad = jnp.zeros((BP, DP), f32).at[:B, :D].set(x.astype(f32))

    grid = (BP // TB,)
    out = pl.pallas_call(
        _mmgn_kernel,
        out_shape=jax.ShapeDtypeStruct((BP, DP), jnp.float32),
        grid=grid,
        in_specs=[
            pl.BlockSpec((TB, DP), lambda i: (i, 0)),   # x: streamed / tiled on batch
            pl.BlockSpec((CP, DP), lambda i: (0, 0)),   # stacked weights: VMEM-resident
            pl.BlockSpec((1, CP), lambda i: (0, 0)),    # bias: resident
            pl.BlockSpec((CP, CP), lambda i: (0, 0)),   # block-diag mean matrix: resident
            pl.BlockSpec((1, CP), lambda i: (0, 0)),    # tail mask: resident
            pl.BlockSpec((1, DP), lambda i: (0, 0)),    # a: resident
        ],
        out_specs=pl.BlockSpec((TB, DP), lambda i: (i, 0)),
        compiler_params=pltpu.CompilerParams(
            dimension_semantics=("parallel",)),
    )(x_pad, m_stack, bias_full, smat, tail_mask, a_pad)

    return out[:B, :D]


def mmgn_reference(x, v_weight, w_stack, b_stack, a):
    """Pure-JAX reference mirroring the PyTorch forward."""
    term1 = (x @ v_weight.T) @ v_weight
    sum_term = jnp.zeros_like(term1)
    for k in range(w_stack.shape[0]):
        z = x @ w_stack[k].T + b_stack[k]
        scale = jnp.mean(z, axis=-1, keepdims=True)
        wa = jnp.tanh(z) @ w_stack[k]
        sum_term = sum_term + scale * wa
    return a[None, :] + term1 + sum_term


if __name__ == "__main__":
    # Small shapes consistent with the module's forward; B=16 with batch_tile=8 so the
    # grid has 2 steps and the batch-pipelining / resident-weight path is exercised.
    B, X_DIM, V_DIM, HIDDEN, NUM_LAYERS = 16, 16, 8, 32, 3

    key = jax.random.PRNGKey(0)
    k_x, k_v, k_w, k_b, k_a = jax.random.split(key, 5)

    x = jax.random.normal(k_x, (B, X_DIM), dtype=jnp.float32)
    # PyTorch inits a/biases to zero; use small random values here so the test
    # exercises every term non-trivially.
    v_weight = jax.random.normal(k_v, (V_DIM, X_DIM), dtype=jnp.float32) * 0.1
    w_stack = jax.random.normal(k_w, (NUM_LAYERS, HIDDEN, X_DIM), dtype=jnp.float32) * 0.1
    b_stack = jax.random.normal(k_b, (NUM_LAYERS, HIDDEN), dtype=jnp.float32) * 0.1
    a = jax.random.normal(k_a, (X_DIM,), dtype=jnp.float32) * 0.1

    out = mmgn_forward(x, v_weight, w_stack, b_stack, a, batch_tile=8)
    out = jax.block_until_ready(out)

    ref = mmgn_reference(x, v_weight, w_stack, b_stack, a)
    assert out.shape == (B, X_DIM)
    assert jnp.allclose(out, ref, atol=1e-4, rtol=1e-4), "Pallas kernel mismatch vs reference"

    print("KERNEL_OK")
</pallas_src>

<mosaic_0001>
module attributes {stable_mosaic.version = 11 : i64} {
  func.func @_mmgn_kernel(%arg0: i32, %arg1: memref<8x128xf32, #tpu.memory_space<vmem>>, %arg2: memref<128x128xf32, #tpu.memory_space<vmem>>, %arg3: memref<1x128xf32, #tpu.memory_space<vmem>>, %arg4: memref<128x128xf32, #tpu.memory_space<vmem>>, %arg5: memref<1x128xf32, #tpu.memory_space<vmem>>, %arg6: memref<1x128xf32, #tpu.memory_space<vmem>>, %arg7: memref<8x128xf32, #tpu.memory_space<vmem>>) attributes {dimension_semantics = [#tpu.dimension_semantics<parallel>], iteration_bounds = array<i64: 2>, scalar_prefetch = 0 : i64, scratch_operands = 0 : i64, tpu.core_type = #tpu.core_type<tc>, window_params = [{transform_indices = @transform_0, window_bounds = array<i64: 8, 128>}, {pipeline_mode = #tpu.pipeline_mode<synchronous>, transform_indices = @transform_1, window_bounds = array<i64: 128, 128>}, {pipeline_mode = #tpu.pipeline_mode<synchronous>, transform_indices = @transform_2, window_bounds = array<i64: 1, 128>}, {pipeline_mode = #tpu.pipeline_mode<synchronous>, transform_indices = @transform_3, window_bounds = array<i64: 128, 128>}, {pipeline_mode = #tpu.pipeline_mode<synchronous>, transform_indices = @transform_4, window_bounds = array<i64: 1, 128>}, {pipeline_mode = #tpu.pipeline_mode<synchronous>, transform_indices = @transform_5, window_bounds = array<i64: 1, 128>}, {transform_indices = @transform_6, window_bounds = array<i64: 8, 128>}]} {
    %c0 = arith.constant 0 : index
    %c0_0 = arith.constant 0 : index
    %0 = vector.load %arg1[%c0, %c0_0] : memref<8x128xf32, #tpu.memory_space<vmem>>, vector<8x128xf32>
    %c0_1 = arith.constant 0 : index
    %c0_2 = arith.constant 0 : index
    %1 = vector.load %arg2[%c0_1, %c0_2] : memref<128x128xf32, #tpu.memory_space<vmem>>, vector<128x128xf32>
    %cst = arith.constant dense<0.000000e+00> : vector<8x128xf32>
    %2 = tpu.matmul %0, %1, %cst {dimension_numbers = #tpu.dot_dimension_numbers<[1], [1], [0], [0], [0, 0, 1, 0], [], []>} : vector<8x128xf32>, vector<128x128xf32>, vector<8x128xf32> -> vector<8x128xf32>
    %c0_3 = arith.constant 0 : index
    %c0_4 = arith.constant 0 : index
    %3 = vector.load %arg3[%c0_3, %c0_4] : memref<1x128xf32, #tpu.memory_space<vmem>>, vector<1x128xf32>
    %4 = vector.broadcast %3 : vector<1x128xf32> to vector<8x128xf32>
    %5 = arith.addf %2, %4 : vector<8x128xf32>
    %c0_5 = arith.constant 0 : index
    %c0_6 = arith.constant 0 : index
    %6 = vector.load %arg4[%c0_5, %c0_6] : memref<128x128xf32, #tpu.memory_space<vmem>>, vector<128x128xf32>
    %cst_7 = arith.constant dense<0.000000e+00> : vector<8x128xf32>
    %7 = tpu.matmul %5, %6, %cst_7 {dimension_numbers = #tpu.dot_dimension_numbers<[1], [0], [0], [1], [0, 0, 1, 1], [], []>} : vector<8x128xf32>, vector<128x128xf32>, vector<8x128xf32> -> vector<8x128xf32>
    %c0_8 = arith.constant 0 : index
    %c0_9 = arith.constant 0 : index
    %8 = vector.load %arg5[%c0_8, %c0_9] : memref<1x128xf32, #tpu.memory_space<vmem>>, vector<1x128xf32>
    %9 = math.tanh %5 : vector<8x128xf32>
    %10 = arith.mulf %7, %9 : vector<8x128xf32>
    %11 = arith.subf %10, %5 : vector<8x128xf32>
    %12 = vector.broadcast %8 : vector<1x128xf32> to vector<8x128xf32>
    %13 = arith.mulf %12, %11 : vector<8x128xf32>
    %14 = arith.addf %5, %13 : vector<8x128xf32>
    %cst_10 = arith.constant dense<0.000000e+00> : vector<8x128xf32>
    %15 = tpu.matmul %14, %1, %cst_10 {dimension_numbers = #tpu.dot_dimension_numbers<[1], [0], [0], [1], [0, 0, 1, 1], [], []>} : vector<8x128xf32>, vector<128x128xf32>, vector<8x128xf32> -> vector<8x128xf32>
    %c0_11 = arith.constant 0 : index
    %c0_12 = arith.constant 0 : index
    %16 = vector.load %arg6[%c0_11, %c0_12] : memref<1x128xf32, #tpu.memory_space<vmem>>, vector<1x128xf32>
    %17 = vector.broadcast %16 : vector<1x128xf32> to vector<8x128xf32>
    %18 = arith.addf %17, %15 : vector<8x128xf32>
    %c0_13 = arith.constant 0 : index
    %c0_14 = arith.constant 0 : index
    %19 = vector.load %arg7[%c0_13, %c0_14] : memref<8x128xf32, #tpu.memory_space<vmem>>, vector<8x128xf32>
    tpu.vector_store %arg7[%c0_13, %c0_14], %18 {strides = array<i32>} : memref<8x128xf32, #tpu.memory_space<vmem>>, vector<8x128xf32>,
    return
  }
  func.func @transform_0(%arg0: i32) -> (i32, i32) {
    %c0_i32 = arith.constant 0 : i32
    %c0_i32_0 = arith.constant 0 : i32
    return %arg0, %c0_i32 : i32, i32
  }
  func.func @transform_1(%arg0: i32) -> (i32, i32) {
    %c0_i32 = arith.constant 0 : i32
    %c0_i32_0 = arith.constant 0 : i32
    %c0_i32_1 = arith.constant 0 : i32
    return %c0_i32, %c0_i32_0 : i32, i32
  }
  func.func @transform_2(%arg0: i32) -> (i32, i32) {
    %c0_i32 = arith.constant 0 : i32
    %c0_i32_0 = arith.constant 0 : i32
    %c0_i32_1 = arith.constant 0 : i32
    return %c0_i32, %c0_i32_0 : i32, i32
  }
  func.func @transform_3(%arg0: i32) -> (i32, i32) {
    %c0_i32 = arith.constant 0 : i32
    %c0_i32_0 = arith.constant 0 : i32
    %c0_i32_1 = arith.constant 0 : i32
    return %c0_i32, %c0_i32_0 : i32, i32
  }
  func.func @transform_4(%arg0: i32) -> (i32, i32) {
    %c0_i32 = arith.constant 0 : i32
    %c0_i32_0 = arith.constant 0 : i32
    %c0_i32_1 = arith.constant 0 : i32
    return %c0_i32, %c0_i32_0 : i32, i32
  }
  func.func @transform_5(%arg0: i32) -> (i32, i32) {
    %c0_i32 = arith.constant 0 : i32
    %c0_i32_0 = arith.constant 0 : i32
    %c0_i32_1 = arith.constant 0 : i32
    return %c0_i32, %c0_i32_0 : i32, i32
  }
  func.func @transform_6(%arg0: i32) -> (i32, i32) {
    %c0_i32 = arith.constant 0 : i32
    %c0_i32_0 = arith.constant 0 : i32
    return %arg0, %c0_i32 : i32, i32
  }
}

</mosaic_0001>

<llo_original>
// kernel: tpu_custom_call.1
$region0: #{tpu_custom_call.1}
  #allocation0 [shape = 'u32[]', space=smem, size = 0x4, offset = 0x4, fixed_abs, tag = 'smem constant byte address 0x4 - core index']
  #allocation1 [shape = 'u32[144,128]{1,0:T(1,128)}', space=vmem, size = 0x12000, scoped, tag = 'internal scratch']
  %s0 = inlined_call_operand.hbm [shape: f32[16,128], index: 0, kind: input, shape index: {}]
  %s1 = inlined_call_operand.hbm [shape: f32[128,128], index: 1, kind: input, shape index: {}]
  %s2 = inlined_call_operand.vmem [shape: f32[1,128], index: 2, kind: input, shape index: {}]
  %s3 = inlined_call_operand.hbm [shape: f32[128,128], index: 3, kind: input, shape index: {}]
  %s4 = inlined_call_operand.vmem [shape: f32[1,128], index: 4, kind: input, shape index: {}]
  %s5 = inlined_call_operand.vmem [shape: f32[1,128], index: 5, kind: input, shape index: {}]
  %s6 = inlined_call_operand.hbm [shape: f32[16,128], index: 6, kind: output, shape index: {}]
  %s7 = sld [smem:[#allocation0]]
  $region69: #{tpu_custom_call.1} parent=0
    _
  %s9 = ssub.s32 1, %s7
  %s10 = scalar_select 0, %s9, %s7
  $region1: #{tpu_custom_call.1} parent=0
    #allocation2 [shape = 'u8[8192]{0}', space=vmem, size = 0x2000, scoped, tag = 'input window, operand 0']
    #allocation3 [shape = 's32[2]{0}', space=sflag, size = 0x8, scoped, tag = 'scoped memory for tpu_custom_call.1']
    #allocation4 [shape = 's32[2]{0}', space=sflag, size = 0x8, scoped, tag = 'scoped memory for tpu_custom_call.1']
    #allocation5 [shape = 'u8[65536]{0}', space=vmem, size = 0x10000, scoped, tag = 'input window, operand 1, single buffered']
    #allocation6 [shape = 's32[1]{0}', space=sflag, size = 0x4, scoped, tag = 'scoped memory for tpu_custom_call.1']
    #allocation7 [shape = 'u8[65536]{0}', space=vmem, size = 0x10000, scoped, tag = 'input window, operand 3, single buffered']
    #allocation8 [shape = 'u8[8192]{0}', space=vmem, size = 0x2000, scoped, tag = 'output window, operand 0']
    %11 = vsyncpa [#allocation3], 0
    %s12 = scalar_lea.sflag [#allocation3], 1
    %13 = vsyncpa %s12, 0
    %14 = vsyncpa [#allocation6], 0
    %15 = vsyncpa [#allocation4], 0
    %s16 = scalar_lea.sflag [#allocation4], 1
    %17 = vsyncpa %s16, 0
    loop: start=0, step=1, limit=4
    $region2: #{tpu_custom_call.1} parent=1 // loop_pre_header
      _
    $region3: #{tpu_custom_call.1} parent=1 // loop_header
      %s19 = sphi 0, %s23
      %p20 = scmp.ge.s32.totalorder %s19, 4
      %s29 = sphi 0, %s31
      %s32 = sphi 0, %s29
      %s33 = sphi 0, %s32
      %s49 = sphi 0, %s33
      %s53 = sphi 0, %s53
      %s55 = sphi 0, %s53
      %s56 = sphi 0, %s55
      %s70 = sphi 0, %s56
      %s74 = sphi 0, %s74
      %s76 = sphi 0, %s74
      %s77 = sphi 0, %s76
      %s91 = sphi 0, %s77
      %s95 = sphi 0, %s95
      %s97 = sphi 0, %s95
      %s98 = sphi 0, %s97
      %s112 = sphi 0, %s98
      %s116 = sphi 0, %s116
      %s118 = sphi 0, %s116
      %s119 = sphi 0, %s118
      %s133 = sphi 0, %s119
      %s137 = sphi 0, %s137
      %s139 = sphi 0, %s137
      %s140 = sphi 0, %s139
      %s154 = sphi 0, %s140
      %s160 = sphi 0, %s162
      %s163 = sphi 0, %s160
      %s164 = sphi 0, %s163
      %s180 = sphi 0, %s164
    $region4: #{tpu_custom_call.1} parent=1 // loop_header_branch
      %22 = sbr.rel (%p20) target = $region8
    $region5: #{tpu_custom_call.1} parent=1 // loop_body
      %s24 = ssub.s32 %s19, 1
      %s25 = ssub.s32 %s19, 2
      %s26 = sadd.s32 %s19, 1
      %s27 = ssub.s32 %s19, %s26
      %p28 = scmp.eq.s32.totalorder %s27, 0
      %s30 = sadd.s32 %s29, 1
      %s31 = scalar_select %p28, %s29, %s30
      %p34 = pneg %p28
      %p35 = scmp.eq.s32.totalorder %s19, 1
      %p36 = por %p34, %p35
      %p37 = scmp.ne.s32.totalorder %s29, %s32
      %p38 = scmp.eq.s32.totalorder %s19, 0
      %p39 = por %p37, %p38
      %p40 = scmp.ne.s32.totalorder %s29, %s32
      %p41 = scmp.eq.s32.totalorder %s24, 1
      %p42 = por %p40, %p41
      %p43 = scmp.ne.s32.totalorder %s32, %s33
      %p44 = scmp.eq.s32.totalorder %s24, 0
      %p45 = por %p43, %p44
      %p46 = scmp.ne.s32.totalorder %s32, %s33
      %p47 = scmp.eq.s32.totalorder %s25, 1
      %p48 = por %p46, %p47
      %p50 = scmp.ne.s32.totalorder %s33, %s49
      %p51 = scmp.eq.s32.totalorder %s25, 0
      %p52 = por %p50, %p51
      %s54 = sadd.s32 %s53, 1
      %p57 = scmp.eq.s32.totalorder %s19, 1
      %p58 = scmp.ne.s32.totalorder %s53, %s55
      %p59 = scmp.eq.s32.totalorder %s19, 0
      %p60 = por %p58, %p59
      %p61 = scmp.ne.s32.totalorder %s53, %s55
      %p62 = scmp.eq.s32.totalorder %s24, 1
      %p63 = por %p61, %p62
      %p64 = scmp.ne.s32.totalorder %s55, %s56
      %p65 = scmp.eq.s32.totalorder %s24, 0
      %p66 = por %p64, %p65
      %p67 = scmp.ne.s32.totalorder %s55, %s56
      %p68 = scmp.eq.s32.totalorder %s25, 1
      %p69 = por %p67, %p68
      %p71 = scmp.ne.s32.totalorder %s56, %s70
      %p72 = scmp.eq.s32.totalorder %s25, 0
      %p73 = por %p71, %p72
      %s75 = sadd.s32 %s74, 1
      %p78 = scmp.eq.s32.totalorder %s19, 1
      %p79 = scmp.ne.s32.totalorder %s74, %s76
      %p80 = scmp.eq.s32.totalorder %s19, 0
      %p81 = por %p79, %p80
      %p82 = scmp.ne.s32.totalorder %s74, %s76
      %p83 = scmp.eq.s32.totalorder %s24, 1
      %p84 = por %p82, %p83
      %p85 = scmp.ne.s32.totalorder %s76, %s77
      %p86 = scmp.eq.s32.totalorder %s24, 0
      %p87 = por %p85, %p86
      %p88 = scmp.ne.s32.totalorder %s76, %s77
      %p89 = scmp.eq.s32.totalorder %s25, 1
      %p90 = por %p88, %p89
      %p92 = scmp.ne.s32.totalorder %s77, %s91
      %p93 = scmp.eq.s32.totalorder %s25, 0
      %p94 = por %p92, %p93
      %s96 = sadd.s32 %s95, 1
      %p99 = scmp.eq.s32.totalorder %s19, 1
      %p100 = scmp.ne.s32.totalorder %s95, %s97
      %p101 = scmp.eq.s32.totalorder %s19, 0
      %p102 = por %p100, %p101
      %p103 = scmp.ne.s32.totalorder %s95, %s97
      %p104 = scmp.eq.s32.totalorder %s24, 1
      %p105 = por %p103, %p104
      %p106 = scmp.ne.s32.totalorder %s97, %s98
      %p107 = scmp.eq.s32.totalorder %s24, 0
      %p108 = por %p106, %p107
      %p109 = scmp.ne.s32.totalorder %s97, %s98
      %p110 = scmp.eq.s32.totalorder %s25, 1
      %p111 = por %p109, %p110
      %p113 = scmp.ne.s32.totalorder %s98, %s112
      %p114 = scmp.eq.s32.totalorder %s25, 0
      %p115 = por %p113, %p114
      %s117 = sadd.s32 %s116, 1
      %p120 = scmp.eq.s32.totalorder %s19, 1
      %p121 = scmp.ne.s32.totalorder %s116, %s118
      %p122 = scmp.eq.s32.totalorder %s19, 0
      %p123 = por %p121, %p122
      %p124 = scmp.ne.s32.totalorder %s116, %s118
      %p125 = scmp.eq.s32.totalorder %s24, 1
      %p126 = por %p124, %p125
      %p127 = scmp.ne.s32.totalorder %s118, %s119
      %p128 = scmp.eq.s32.totalorder %s24, 0
      %p129 = por %p127, %p128
      %p130 = scmp.ne.s32.totalorder %s118, %s119
      %p131 = scmp.eq.s32.totalorder %s25, 1
      %p132 = por %p130, %p131
      %p134 = scmp.ne.s32.totalorder %s119, %s133
      %p135 = scmp.eq.s32.totalorder %s25, 0
      %p136 = por %p134, %p135
      %s138 = sadd.s32 %s137, 1
      %p141 = scmp.eq.s32.totalorder %s19, 1
      %p142 = scmp.ne.s32.totalorder %s137, %s139
      %p143 = scmp.eq.s32.totalorder %s19, 0
      %p144 = por %p142, %p143
      %p145 = scmp.ne.s32.totalorder %s137, %s139
      %p146 = scmp.eq.s32.totalorder %s24, 1
      %p147 = por %p145, %p146
      %p148 = scmp.ne.s32.totalorder %s139, %s140
      %p149 = scmp.eq.s32.totalorder %s24, 0
      %p150 = por %p148, %p149
      %p151 = scmp.ne.s32.totalorder %s139, %s140
      %p152 = scmp.eq.s32.totalorder %s25, 1
      %p153 = por %p151, %p152
      %p155 = scmp.ne.s32.totalorder %s140, %s154
      %p156 = scmp.eq.s32.totalorder %s25, 0
      %p157 = por %p155, %p156
      %s158 = ssub.s32 %s19, %s26
      %p159 = scmp.eq.s32.totalorder %s158, 0
      %s161 = sadd.s32 %s160, 1
      %s162 = scalar_select %p159, %s160, %s161
      %p165 = pneg %p159
      %p166 = scmp.eq.s32.totalorder %s19, 1
      %p167 = por %p165, %p166
      %p168 = scmp.ne.s32.totalorder %s160, %s163
      %p169 = scmp.eq.s32.totalorder %s19, 0
      %p170 = por %p168, %p169
      %p171 = scmp.ne.s32.totalorder %s160, %s163
      %p172 = scmp.eq.s32.totalorder %s24, 1
      %p173 = por %p171, %p172
      %p174 = scmp.ne.s32.totalorder %s163, %s164
      %p175 = scmp.eq.s32.totalorder %s24, 0
      %p176 = por %p174, %p175
      %p177 = scmp.ne.s32.totalorder %s163, %s164
      %p178 = scmp.eq.s32.totalorder %s25, 1
      %p179 = por %p177, %p178
      %p181 = scmp.ne.s32.totalorder %s164, %s180
      %p182 = scmp.eq.s32.totalorder %s25, 0
      %p183 = por %p181, %p182
      %p184 = scmp.le.s32.totalorder 1, %s19
      %p185 = scmp.lt.s32.totalorder %s19, 3
      %p186 = pnand %p184, %p185
      %p187 = pneg %p186
      // Predicated region
      $region9: #{tpu_custom_call.1} parent=5 // pred_check
        _
      $region10: #{tpu_custom_call.1} parent=5 // pred_check_branch
        %189 = sbr.rel (%p186) target = $region12
      $region11: #{tpu_custom_call.1} parent=5 // pred_region
        %s190 = ssub.s32 %s19, 1
        // Predicated region
        $region13: #{tpu_custom_call.1} parent=11 // pred_check
          %p191 = pneg %p66
        $region14: #{tpu_custom_call.1} parent=11 // pred_check_branch
          %193 = sbr.rel (%p191) target = $region16
        $region15: #{tpu_custom_call.1} parent=11 // pred_region
          %s195 = ssub.s32 2048, 2048
          %196 = vsyncadd [#allocation6], %s195
          %s197 = sshll.u32 [#allocation5], 4
          %s198 = int_to_ptr.vmem [resolvable:$true] %s197
          %203 = dma.hbm_to_vmem [thread:$0]  %s1, 2048, %s198, [#allocation6], 128, 128, 8
        $region16: #{tpu_custom_call.1} parent=11 // pred_fallthru
          _
        // Predicated region
        $region17: #{tpu_custom_call.1} parent=11 // pred_check
          %p204 = pneg %p87
        $region18: #{tpu_custom_call.1} parent=11 // pred_check_branch
          %206 = sbr.rel (%p204) target = $region20
        $region19: #{tpu_custom_call.1} parent=11 // pred_region
          _
        $region20: #{tpu_custom_call.1} parent=11 // pred_fallthru
          _
        // Predicated region
        $region21: #{tpu_custom_call.1} parent=11 // pred_check
          %p207 = pneg %p108
        $region22: #{tpu_custom_call.1} parent=11 // pred_check_branch
          %209 = sbr.rel (%p207) target = $region24
        $region23: #{tpu_custom_call.1} parent=11 // pred_region
          %s211 = ssub.s32 2048, 2048
          %212 = vsyncadd [#allocation6], %s211
          %s213 = sshll.u32 [#allocation7], 4
          %s214 = int_to_ptr.vmem [resolvable:$true] %s213
          %219 = dma.hbm_to_vmem [thread:$0]  %s3, 2048, %s214, [#allocation6], 128, 128, 8
        $region24: #{tpu_custom_call.1} parent=11 // pred_fallthru
          _
        // Predicated region
        $region25: #{tpu_custom_call.1} parent=11 // pred_check
          %p220 = pneg %p129
        $region26: #{tpu_custom_call.1} parent=11 // pred_check_branch
          %222 = sbr.rel (%p220) target = $region28
        $region27: #{tpu_custom_call.1} parent=11 // pred_region
          _
        $region28: #{tpu_custom_call.1} parent=11 // pred_fallthru
          _
        // Predicated region
        $region29: #{tpu_custom_call.1} parent=11 // pred_check
          %p223 = pneg %p150
        $region30: #{tpu_custom_call.1} parent=11 // pred_check_branch
          %225 = sbr.rel (%p223) target = $region32
        $region31: #{tpu_custom_call.1} parent=11 // pred_region
          _
        $region32: #{tpu_custom_call.1} parent=11 // pred_fallthru
          _
      $region12: #{tpu_custom_call.1} parent=5 // pred_fallthru
        _
      %p226 = scmp.lt.s32.totalorder %s19, 2
      // Predicated region
      $region33: #{tpu_custom_call.1} parent=5 // pred_check
        %p227 = pneg %p226
      $region34: #{tpu_custom_call.1} parent=5 // pred_check_branch
        %229 = sbr.rel (%p227) target = $region36
      $region35: #{tpu_custom_call.1} parent=5 // pred_region
        // Predicated region
        $region37: #{tpu_custom_call.1} parent=35 // pred_check
          %p230 = pneg %p39
        $region38: #{tpu_custom_call.1} parent=35 // pred_check_branch
          %232 = sbr.rel (%p230) target = $region40
        $region39: #{tpu_custom_call.1} parent=35 // pred_region
          %s233 = sand.u32 %s29, 1
          %s234 = scalar_lea.sflag [#allocation3], %s233
          %s235 = sand.u32 %s29, 1
          %s236 = smul.addr %s235, 8
          %s237 = scalar_lea.vmem [#allocation2], %s236
          %s239 = ssub.s32 128, 128
          %240 = vsyncadd %s234, %s239
          %s241 = smul.addr %s19, 128
          %s242 = scalar_lea.hbm %s0, %s241
          %s244 = sshll.u32 %s237, 4
          %s245 = int_to_ptr.vmem [resolvable:$true] %s244
          %247 = dma.hbm_to_vmem [thread:$0]  %s242, 128, %s245, %s234
        $region40: #{tpu_custom_call.1} parent=35 // pred_fallthru
          _
      $region36: #{tpu_custom_call.1} parent=5 // pred_fallthru
        _
      %p248 = scmp.le.s32.totalorder 1, %s19
      %p249 = scmp.lt.s32.totalorder %s19, 3
      %p250 = pnand %p248, %p249
      %p251 = pneg %p250
      // Predicated region
      $region41: #{tpu_custom_call.1} parent=5 // pred_check
        _
      $region42: #{tpu_custom_call.1} parent=5 // pred_check_branch
        %253 = sbr.rel (%p250) target = $region44
      $region43: #{tpu_custom_call.1} parent=5 // pred_region
        %s254 = ssub.s32 %s19, 1
        %s255 = sand.u32 %s32, 1
        %s256 = scalar_lea.sflag [#allocation3], %s255
        %s257 = sand.u32 %s32, 1
        %s258 = smul.addr %s257, 8
        %s259 = scalar_lea.vmem [#allocation2], %s258
        // Predicated region
        $region45: #{tpu_custom_call.1} parent=43 // pred_check
          %p260 = pneg %p45
        $region46: #{tpu_custom_call.1} parent=43 // pred_check_branch
          %262 = sbr.rel (%p260) target = $region48
        $region47: #{tpu_custom_call.1} parent=43 // pred_region
          %263 = dma.done %s256, 128
        $region48: #{tpu_custom_call.1} parent=43 // pred_fallthru
          _
        // Predicated region
        $region49: #{tpu_custom_call.1} parent=43 // pred_check
          %p264 = pneg %p66
        $region50: #{tpu_custom_call.1} parent=43 // pred_check_branch
          %266 = sbr.rel (%p264) target = $region52
        $region51: #{tpu_custom_call.1} parent=43 // pred_region
          %267 = dma.done [#allocation6], 2048
        $region52: #{tpu_custom_call.1} parent=43 // pred_fallthru
          _
        // Predicated region
        $region53: #{tpu_custom_call.1} parent=43 // pred_check
          %p268 = pneg %p108
        $region54: #{tpu_custom_call.1} parent=43 // pred_check_branch
          %270 = sbr.rel (%p268) target = $region56
        $region55: #{tpu_custom_call.1} parent=43 // pred_region
          %271 = dma.done [#allocation6], 2048
        $region56: #{tpu_custom_call.1} parent=43 // pred_fallthru
          _
        %s272 = sand.u32 %s32, 1
        %s273 = scalar_lea.sflag [#allocation3], %s272
        %s274 = sand.u32 %s32, 1
        %s275 = smul.addr %s274, 8
        %s276 = scalar_lea.vmem [#allocation2], %s275
        %p277 = pneg %p45
        %p278 = pneg %p42
        %p279 = pneg %p66
        %p280 = pneg %p63
        %p281 = pneg %p87
        %p282 = pneg %p84
        %p283 = pneg %p108
        %p284 = pneg %p105
        %p285 = pneg %p129
        %p286 = pneg %p126
        %p287 = pneg %p150
        %p288 = pneg %p147
        %p289 = pneg %p176
        %p290 = pneg %p173
        %s291 = sand.u32 %s163, 1
        %s292 = scalar_lea.sflag [#allocation4], %s291
        %s293 = sand.u32 %s163, 1
        %s294 = smul.addr %s293, 8
        %s295 = scalar_lea.vmem [#allocation8], %s294
        %v296 = vld [vmem:[%s259] sm:$0xff]
        %v297 = vld [vmem:[#allocation5] sm:$0xff]
        %v298 = vld [vmem:[#allocation5 + $0x8] sm:$0xff]
        %v299 = vld [vmem:[#allocation5 + $0x10] sm:$0xff]
        %v300 = vld [vmem:[#allocation5 + $0x18] sm:$0xff]
        %v301 = vld [vmem:[#allocation5 + $0x20] sm:$0xff]
        %v302 = vld [vmem:[#allocation5 + $0x28] sm:$0xff]
        %v303 = vld [vmem:[#allocation5 + $0x30] sm:$0xff]
        %v304 = vld [vmem:[#allocation5 + $0x38] sm:$0xff]
        %v305 = vld [vmem:[#allocation5 + $0x40] sm:$0xff]
        %v306 = vld [vmem:[#allocation5 + $0x48] sm:$0xff]
        %v307 = vld [vmem:[#allocation5 + $0x50] sm:$0xff]
        %v308 = vld [vmem:[#allocation5 + $0x58] sm:$0xff]
        %v309 = vld [vmem:[#allocation5 + $0x60] sm:$0xff]
        %v310 = vld [vmem:[#allocation5 + $0x68] sm:$0xff]
        %v311 = vld [vmem:[#allocation5 + $0x70] sm:$0xff]
        %v312 = vld [vmem:[#allocation5 + $0x78] sm:$0xff]
        %v313 = vld [vmem:[%s2] sm:$0x1]
        %v315 = vlaneseq
        %v316 = vshrl.u32 %v315, 7
        %v317 = vsub.s32 0, %v316
        %v318 = vrot.slane %v313, %v317
        %320 = vmatprep.subr.mxu0 0.0
        %321 = vmatpush1.xpose.msra.mxu0 %v312
        %322 = vmatprep.subr.mxu0 0.0
        %323 = vmatpush1.xpose.msra.mxu0 %v311
        %324 = vmatprep.subr.mxu0 0.0
        %325 = vmatpush1.xpose.msra.mxu0 %v310
        %326 = vmatprep.subr.mxu0 0.0
        %327 = vmatpush1.xpose.msra.mxu0 %v309
        %328 = vmatprep.subr.mxu0 0.0
        %329 = vmatpush1.xpose.msra.mxu0 %v308
        %330 = vmatprep.subr.mxu0 0.0
        %331 = vmatpush1.xpose.msra.mxu0 %v307
        %332 = vmatprep.subr.mxu0 0.0
        %333 = vmatpush1.xpose.msra.mxu0 %v306
        %334 = vmatprep.subr.mxu0 0.0
        %335 = vmatpush1.xpose.msra.mxu0 %v305
        %336 = vmatprep.subr.mxu0 0.0
        %337 = vmatpush1.xpose.msra.mxu0 %v304
        %338 = vmatprep.subr.mxu0 0.0
        %339 = vmatpush1.xpose.msra.mxu0 %v303
        %340 = vmatprep.subr.mxu0 0.0
        %341 = vmatpush1.xpose.msra.mxu0 %v302
        %342 = vmatprep.subr.mxu0 0.0
        %343 = vmatpush1.xpose.msra.mxu0 %v301
        %344 = vmatprep.subr.mxu0 0.0
        %345 = vmatpush1.xpose.msra.mxu0 %v300
        %346 = vmatprep.subr.mxu0 0.0
        %347 = vmatpush1.xpose.msra.mxu0 %v299
        %348 = vmatprep.subr.mxu0 0.0
        %349 = vmatpush1.xpose.msra.mxu0 %v298
        %350 = vmatprep.subr.mxu0 0.0
        %351 = vmatpush1.xpose.msra.mxu0 %v297
        %352 = vmatprep.subr.mxu0 0.0
        %353 = vmatpush2.xpose.msra.mxu0 0.0
        %354 = vmatprep.subr.mxu0 0.0
        %355 = vmatpush2.xpose.msra.mxu0 0.0
        %356 = vmatprep.subr.mxu0 0.0
        %357 = vmatpush2.xpose.msra.mxu0 0.0
        %358 = vmatprep.subr.mxu0 0.0
        %359 = vmatpush2.xpose.msra.mxu0 0.0
        %360 = vmatprep.subr.mxu0 0.0
        %361 = vmatpush2.xpose.msra.mxu0 0.0
        %362 = vmatprep.subr.mxu0 0.0
        %363 = vmatpush2.xpose.msra.mxu0 0.0
        %364 = vmatprep.subr.mxu0 0.0
        %365 = vmatpush2.xpose.msra.mxu0 0.0
        %366 = vmatprep.subr.mxu0 0.0
        %367 = vmatpush2.xpose.msra.mxu0 0.0
        %368 = vmatprep.subr.mxu0 0.0
        %369 = vmatpush2.xpose.msra.mxu0 0.0
        %370 = vmatprep.subr.mxu0 0.0
        %371 = vmatpush2.xpose.msra.mxu0 0.0
        %372 = vmatprep.subr.mxu0 0.0
        %373 = vmatpush2.xpose.msra.mxu0 0.0
        %374 = vmatprep.subr.mxu0 0.0
        %375 = vmatpush2.xpose.msra.mxu0 0.0
        %376 = vmatprep.subr.mxu0 0.0
        %377 = vmatpush2.xpose.msra.mxu0 0.0
        %378 = vmatprep.subr.mxu0 0.0
        %379 = vmatpush2.xpose.msra.mxu0 0.0
        %380 = vmatprep.subr.mxu0 0.0
        %381 = vmatpush2.xpose.msra.mxu0 0.0
        %382 = vmatprep.subr.mxu0 0.0
        %383 = vmatpush2.xpose.msra.mxu0 0.0
        %384 = vmatprep.mubr.f32.mxu0 0.0
        %385 = vmatmul.mubr.f32.gmra.mxu0 %v296
        %v386 = vpop.f32.mrf.mxu0
        %v387 = vadd.f32 %v318, %v386
        %v388 = vpop.f32.mrf.mxu0
        %389 = vdwg.mxu0
        %v390 = vld [vmem:[#allocation7] sm:$0xff]
        %v391 = vld [vmem:[#allocation7 + $0x8] sm:$0xff]
        %v392 = vld [vmem:[#allocation7 + $0x10] sm:$0xff]
        %v393 = vld [vmem:[#allocation7 + $0x18] sm:$0xff]
        %v394 = vld [vmem:[#allocation7 + $0x20] sm:$0xff]
        %v395 = vld [vmem:[#allocation7 + $0x28] sm:$0xff]
        %v396 = vld [vmem:[#allocation7 + $0x30] sm:$0xff]
        %v397 = vld [vmem:[#allocation7 + $0x38] sm:$0xff]
        %v398 = vld [vmem:[#allocation7 + $0x40] sm:$0xff]
        %v399 = vld [vmem:[#allocation7 + $0x48] sm:$0xff]
        %v400 = vld [vmem:[#allocation7 + $0x50] sm:$0xff]
        %v401 = vld [vmem:[#allocation7 + $0x58] sm:$0xff]
        %v402 = vld [vmem:[#allocation7 + $0x60] sm:$0xff]
        %v403 = vld [vmem:[#allocation7 + $0x68] sm:$0xff]
        %v404 = vld [vmem:[#allocation7 + $0x70] sm:$0xff]
        %v405 = vld [vmem:[#allocation7 + $0x78] sm:$0xff]
        %406 = vmatprep.subr.mxu0 0.0
        %407 = vmatpush1.msra.mxu0 %v405
        %408 = vmatprep.subr.mxu0 0.0
        %409 = vmatpush1.msra.mxu0 %v404
        %410 = vmatprep.subr.mxu0 0.0
        %411 = vmatpush1.msra.mxu0 %v403
        %412 = vmatprep.subr.mxu0 0.0
        %413 = vmatpush1.msra.mxu0 %v402
        %414 = vmatprep.subr.mxu0 0.0
        %415 = vmatpush1.msra.mxu0 %v401
        %416 = vmatprep.subr.mxu0 0.0
        %417 = vmatpush1.msra.mxu0 %v400
        %418 = vmatprep.subr.mxu0 0.0
        %419 = vmatpush1.msra.mxu0 %v399
        %420 = vmatprep.subr.mxu0 0.0
        %421 = vmatpush1.msra.mxu0 %v398
        %422 = vmatprep.subr.mxu0 0.0
        %423 = vmatpush1.msra.mxu0 %v397
        %424 = vmatprep.subr.mxu0 0.0
        %425 = vmatpush1.msra.mxu0 %v396
        %426 = vmatprep.subr.mxu0 0.0
        %427 = vmatpush1.msra.mxu0 %v395
        %428 = vmatprep.subr.mxu0 0.0
        %429 = vmatpush1.msra.mxu0 %v394
        %430 = vmatprep.subr.mxu0 0.0
        %431 = vmatpush1.msra.mxu0 %v393
        %432 = vmatprep.subr.mxu0 0.0
        %433 = vmatpush1.msra.mxu0 %v392
        %434 = vmatprep.subr.mxu0 0.0
        %435 = vmatpush1.msra.mxu0 %v391
        %436 = vmatprep.subr.mxu0 0.0
        %437 = vmatpush1.msra.mxu0 %v390
        %438 = vmatprep.subr.mxu0 0.0
        %439 = vmatpush2.msra.mxu0 0.0
        %440 = vmatprep.subr.mxu0 0.0
        %441 = vmatpush2.msra.mxu0 0.0
        %442 = vmatprep.subr.mxu0 0.0
        %443 = vmatpush2.msra.mxu0 0.0
        %444 = vmatprep.subr.mxu0 0.0
        %445 = vmatpush2.msra.mxu0 0.0
        %446 = vmatprep.subr.mxu0 0.0
        %447 = vmatpush2.msra.mxu0 0.0
        %448 = vmatprep.subr.mxu0 0.0
        %449 = vmatpush2.msra.mxu0 0.0
        %450 = vmatprep.subr.mxu0 0.0
        %451 = vmatpush2.msra.mxu0 0.0
        %452 = vmatprep.subr.mxu0 0.0
        %453 = vmatpush2.msra.mxu0 0.0
        %454 = vmatprep.subr.mxu0 0.0
        %455 = vmatpush2.msra.mxu0 0.0
        %456 = vmatprep.subr.mxu0 0.0
        %457 = vmatpush2.msra.mxu0 0.0
        %458 = vmatprep.subr.mxu0 0.0
        %459 = vmatpush2.msra.mxu0 0.0
        %460 = vmatprep.subr.mxu0 0.0
        %461 = vmatpush2.msra.mxu0 0.0
        %462 = vmatprep.subr.mxu0 0.0
        %463 = vmatpush2.msra.mxu0 0.0
        %464 = vmatprep.subr.mxu0 0.0
        %465 = vmatpush2.msra.mxu0 0.0
        %466 = vmatprep.subr.mxu0 0.0
        %467 = vmatpush2.msra.mxu0 0.0
        %468 = vmatprep.subr.mxu0 0.0
        %469 = vmatpush2.msra.mxu0 0.0
        %470 = vmatprep.mubr.f32.mxu0 0.0
        %471 = vmatmul.mubr.f32.gmra.mxu0 %v387
        %v472 = vpop.f32.mrf.mxu0
        %v473 = vadd.f32 0.0, %v472
        %v474 = vpop.f32.mrf.mxu0
        %475 = vdwg.mxu0
        %v476 = vld [vmem:[%s4] sm:$0x1]
        %v477 = vtanh.pop %v387
        %v478 = vmul.f32 %v473, %v477
        %v479 = vsub.f32 %v478, %v387
        %v481 = vlaneseq
        %v482 = vshrl.u32 %v481, 7
        %v483 = vsub.s32 0, %v482
        %v484 = vrot.slane %v476, %v483
        %v486 = vmul.f32 %v484, %v479
        %v487 = vadd.f32 %v387, %v486
        %488 = vmatprep.subr.mxu0 0.0
        %489 = vmatpush1.msra.mxu0 %v312
        %490 = vmatprep.subr.mxu0 0.0
        %491 = vmatpush1.msra.mxu0 %v311
        %492 = vmatprep.subr.mxu0 0.0
        %493 = vmatpush1.msra.mxu0 %v310
        %494 = vmatprep.subr.mxu0 0.0
        %495 = vmatpush1.msra.mxu0 %v309
        %496 = vmatprep.subr.mxu0 0.0
        %497 = vmatpush1.msra.mxu0 %v308
        %498 = vmatprep.subr.mxu0 0.0
        %499 = vmatpush1.msra.mxu0 %v307
        %500 = vmatprep.subr.mxu0 0.0
        %501 = vmatpush1.msra.mxu0 %v306
        %502 = vmatprep.subr.mxu0 0.0
        %503 = vmatpush1.msra.mxu0 %v305
        %504 = vmatprep.subr.mxu0 0.0
        %505 = vmatpush1.msra.mxu0 %v304
        %506 = vmatprep.subr.mxu0 0.0
        %507 = vmatpush1.msra.mxu0 %v303
        %508 = vmatprep.subr.mxu0 0.0
        %509 = vmatpush1.msra.mxu0 %v302
        %510 = vmatprep.subr.mxu0 0.0
        %511 = vmatpush1.msra.mxu0 %v301
        %512 = vmatprep.subr.mxu0 0.0
        %513 = vmatpush1.msra.mxu0 %v300
        %514 = vmatprep.subr.mxu0 0.0
        %515 = vmatpush1.msra.mxu0 %v299
        %516 = vmatprep.subr.mxu0 0.0
        %517 = vmatpush1.msra.mxu0 %v298
        %518 = vmatprep.subr.mxu0 0.0
        %519 = vmatpush1.msra.mxu0 %v297
        %520 = vmatprep.subr.mxu0 0.0
        %521 = vmatpush2.msra.mxu0 0.0
        %522 = vmatprep.subr.mxu0 0.0
        %523 = vmatpush2.msra.mxu0 0.0
        %524 = vmatprep.subr.mxu0 0.0
        %525 = vmatpush2.msra.mxu0 0.0
        %526 = vmatprep.subr.mxu0 0.0
        %527 = vmatpush2.msra.mxu0 0.0
        %528 = vmatprep.subr.mxu0 0.0
        %529 = vmatpush2.msra.mxu0 0.0
        %530 = vmatprep.subr.mxu0 0.0
        %531 = vmatpush2.msra.mxu0 0.0
        %532 = vmatprep.subr.mxu0 0.0
        %533 = vmatpush2.msra.mxu0 0.0
        %534 = vmatprep.subr.mxu0 0.0
        %535 = vmatpush2.msra.mxu0 0.0
        %536 = vmatprep.subr.mxu0 0.0
        %537 = vmatpush2.msra.mxu0 0.0
        %538 = vmatprep.subr.mxu0 0.0
        %539 = vmatpush2.msra.mxu0 0.0
        %540 = vmatprep.subr.mxu0 0.0
        %541 = vmatpush2.msra.mxu0 0.0
        %542 = vmatprep.subr.mxu0 0.0
        %543 = vmatpush2.msra.mxu0 0.0
        %544 = vmatprep.subr.mxu0 0.0
        %545 = vmatpush2.msra.mxu0 0.0
        %546 = vmatprep.subr.mxu0 0.0
        %547 = vmatpush2.msra.mxu0 0.0
        %548 = vmatprep.subr.mxu0 0.0
        %549 = vmatpush2.msra.mxu0 0.0
        %550 = vmatprep.subr.mxu0 0.0
        %551 = vmatpush2.msra.mxu0 0.0
        %552 = vmatprep.mubr.f32.mxu0 0.0
        %553 = vmatmul.mubr.f32.gmra.mxu0 %v487
        %v554 = vpop.f32.mrf.mxu0
        %v555 = vadd.f32 0.0, %v554
        %v556 = vpop.f32.mrf.mxu0
        %557 = vdwg.mxu0
        %v558 = vld [vmem:[%s5] sm:$0x1]
        %v560 = vlaneseq
        %v561 = vshrl.u32 %v560, 7
        %v562 = vsub.s32 0, %v561
        %v563 = vrot.slane %v558, %v562
        %v565 = vadd.f32 %v563, %v555
        %566 = vst [vmem:[%s295] sm:$0xff] %v565
        %s567 = sand.u32 %s163, 1
        %s568 = scalar_lea.sflag [#allocation4], %s567
        %s569 = sand.u32 %s163, 1
        %s570 = smul.addr %s569, 8
        %s571 = scalar_lea.vmem [#allocation8], %s570
        // Predicated region
        $region57: #{tpu_custom_call.1} parent=43 // pred_check
          %p572 = pneg %p173
        $region58: #{tpu_custom_call.1} parent=43 // pred_check_branch
          %574 = sbr.rel (%p572) target = $region60
        $region59: #{tpu_custom_call.1} parent=43 // pred_region
          %s576 = ssub.s32 128, 128
          %577 = vsyncadd %s568, %s576
          %s578 = smul.addr %s24, 128
          %s579 = scalar_lea.hbm %s6, %s578
          %s581 = sshll.u32 %s571, 4
          %s582 = int_to_ptr.vmem [resolvable:$true] %s581
          %584 = dma.vmem_to_hbm [thread:$0]  %s582, 128, %s579, %s568
        $region60: #{tpu_custom_call.1} parent=43 // pred_fallthru
          _
      $region44: #{tpu_custom_call.1} parent=5 // pred_fallthru
        _
      %p585 = scmp.le.s32.totalorder 2, %s19
      // Predicated region
      $region61: #{tpu_custom_call.1} parent=5 // pred_check
        %p586 = pneg %p585
      $region62: #{tpu_custom_call.1} parent=5 // pred_check_branch
        %588 = sbr.rel (%p586) target = $region64
      $region63: #{tpu_custom_call.1} parent=5 // pred_region
        %s589 = ssub.s32 %s19, 2
        // Predicated region
        $region65: #{tpu_custom_call.1} parent=63 // pred_check
          %p590 = pneg %p179
        $region66: #{tpu_custom_call.1} parent=63 // pred_check_branch
          %592 = sbr.rel (%p590) target = $region68
        $region67: #{tpu_custom_call.1} parent=63 // pred_region
          %s593 = sand.u32 %s164, 1
          %s594 = scalar_lea.sflag [#allocation4], %s593
          %s595 = sand.u32 %s164, 1
          %s596 = smul.addr %s595, 8
          %s597 = scalar_lea.vmem [#allocation8], %s596
          %598 = dma.done %s594, 128
        $region68: #{tpu_custom_call.1} parent=63 // pred_fallthru
          _
      $region64: #{tpu_custom_call.1} parent=5 // pred_fallthru
        _
    $region6: #{tpu_custom_call.1} parent=1 // loop_footer
      %s23 = sadd.s32 1, %s19
    $region7: #{tpu_custom_call.1} parent=1 // loop_footer_branch
      %18 = sbr.rel target = $region3
    $region8: #{tpu_custom_call.1} parent=1 // loop_exit
      _
    %599 = vsyncpa [#allocation3], 1
    %s600 = scalar_lea.sflag [#allocation3], 1
    %601 = vsyncpa %s600, 1
    %602 = vsyncpa [#allocation6], 1
    %603 = vsyncpa [#allocation4], 1
    %s604 = scalar_lea.sflag [#allocation4], 1
    %605 = vsyncpa %s604, 1

</llo_original>
